<compile_context>
chip_gen: v5e
topology: v5e:2x2
jax: 0.10.0
libtpu: 0.0.40
codegen_flags: <defaults>
</compile_context>

<pallas_src>
import numpy as np
import jax
import jax.numpy as jnp
from jax.experimental import pallas as pl
from jax.experimental.pallas import tpu as pltpu


def _round_up(x, m):
    return ((x + m - 1) // m) * m


def _leaky_relu(x, slope=0.1):
    return jnp.where(x > 0, x, slope * x)


def _layer_norm_1pass(x, gamma, beta, eps=1e-5):
    # one pass over lanes: mean and mean-of-squares, then var = E[x^2] - mu^2
    n = x.shape[-1]
    mu = jnp.sum(x, axis=-1, keepdims=True) * (1.0 / n)
    msq = jnp.sum(x * x, axis=-1, keepdims=True) * (1.0 / n)
    var = jnp.maximum(msq - mu * mu, 0.0)
    return (x - mu) * jax.lax.rsqrt(var + eps) * gamma + beta


def qnetwork_kernel(state_ref, action_ref,
                    w1s_ref, w1a_ref, b1_ref, g1_ref, be1_ref,
                    w2_ref, b2_ref, g2_ref, be2_ref,
                    w3_ref, b3_ref,
                    out_ref):
    s = state_ref[...]
    a = action_ref[...]

    # Layer 1: fused concat -> split matmul, + bias, LeakyReLU, LayerNorm.
    h = (jnp.dot(s, w1s_ref[...], preferred_element_type=jnp.float32)
         + jnp.dot(a, w1a_ref[...], preferred_element_type=jnp.float32)
         + b1_ref[...])
    h = _leaky_relu(h)
    h = _layer_norm_1pass(h, g1_ref[...], be1_ref[...])

    # Layer 2.
    h = jnp.dot(h, w2_ref[...], preferred_element_type=jnp.float32) + b2_ref[...]
    h = _leaky_relu(h)
    h = _layer_norm_1pass(h, g2_ref[...], be2_ref[...])

    # Head: (1,H) . (TB,H)^T -> (1, TB): batch lives on the lane axis, so the
    # store is lane-dense (no masked vst.msk on a width-1 output).
    q = jax.lax.dot_general(
        w3_ref[...], h,
        dimension_numbers=(((1,), (1,)), ((), ())),
        preferred_element_type=jnp.float32)
    out_ref[...] = (q + b3_ref[0, 0]).astype(out_ref.dtype)


def qnetwork_forward(state, action, params, *, block_b=512):
    """state: (B, S), action: (B, A) -> (B, 1) float32."""
    B, S = state.shape
    A = action.shape[1]
    H = params["b1"].shape[-1]

    # Batch tile: whole (8-rounded) batch if it is small, otherwise a multiple
    # of 128 (lane-dense output constraint) capped at block_b (VMEM budget).
    if B <= block_b:
        tb = _round_up(B, 8)
        padded_b = tb
    else:
        tb = _round_up(block_b, 128)
        padded_b = _round_up(B, tb)

    if padded_b != B:
        pad = padded_b - B
        state = jnp.pad(state, ((0, pad), (0, 0)))
        action = jnp.pad(action, ((0, pad), (0, 0)))

    num_tiles = padded_b // tb

    def full_spec(shape):
        return pl.BlockSpec(shape, lambda i: (0, 0))

    in_specs = [
        pl.BlockSpec((tb, S), lambda i: (i, 0)),      # state tile
        pl.BlockSpec((tb, A), lambda i: (i, 0)),      # action tile
        full_spec((S, H)),                            # w1s
        full_spec((A, H)),                            # w1a
        full_spec((1, H)),                            # b1
        full_spec((1, H)),                            # g1
        full_spec((1, H)),                            # be1
        full_spec((H, H)),                            # w2
        full_spec((1, H)),                            # b2
        full_spec((1, H)),                            # g2
        full_spec((1, H)),                            # be2
        full_spec((1, H)),                            # w3 (row)
        pl.BlockSpec(memory_space=pltpu.MemorySpace.SMEM),  # b3 scalar
    ]
    out_spec = pl.BlockSpec((1, tb), lambda i: (0, i))

    out = pl.pallas_call(
        qnetwork_kernel,
        out_shape=jax.ShapeDtypeStruct((1, padded_b), jnp.float32),
        grid=(num_tiles,),
        in_specs=in_specs,
        out_specs=out_spec,
        compiler_params=pltpu.CompilerParams(
            dimension_semantics=("parallel",)),
    )(
        state, action,
        params["w1s"], params["w1a"], params["b1"], params["g1"], params["be1"],
        params["w2"], params["b2"], params["g2"], params["be2"],
        params["w3"], params["b3"],
    )
    # layout plumbing back to the PyTorch (B, 1) shape
    return out.reshape(padded_b, 1)[:B]


def init_params(key, state_dim, action_dim, hidden_dim):
    """orthogonal(gain=sqrt(2)) weights, zero biases, LN gamma=1 / beta=0.
    w1 is stored pre-split (w1s: (S,H), w1a: (A,H)); w3 stored as a (1,H) row."""
    in_dim = state_dim + action_dim
    ortho = jax.nn.initializers.orthogonal(scale=float(np.sqrt(2.0)))
    k1, k2, k3 = jax.random.split(key, 3)
    w1 = ortho(k1, (hidden_dim, in_dim), jnp.float32).T          # (S+A, H)
    return {
        "w1s": w1[:state_dim],
        "w1a": w1[state_dim:],
        "b1": jnp.zeros((1, hidden_dim), jnp.float32),
        "g1": jnp.ones((1, hidden_dim), jnp.float32),
        "be1": jnp.zeros((1, hidden_dim), jnp.float32),
        "w2": ortho(k2, (hidden_dim, hidden_dim), jnp.float32).T,
        "b2": jnp.zeros((1, hidden_dim), jnp.float32),
        "g2": jnp.ones((1, hidden_dim), jnp.float32),
        "be2": jnp.zeros((1, hidden_dim), jnp.float32),
        "w3": ortho(k3, (1, hidden_dim), jnp.float32),           # (1, H) row
        "b3": jnp.zeros((1, 1), jnp.float32),
    }


def reference_forward(state, action, params):
    """Pure-JAX reference mirroring the PyTorch module exactly."""
    w1 = jnp.concatenate([params["w1s"], params["w1a"]], axis=0)
    x = jnp.concatenate([state, action], axis=1)
    h = x @ w1 + params["b1"]
    h = jnp.where(h > 0, h, 0.1 * h)
    mu = jnp.mean(h, axis=-1, keepdims=True)
    var = jnp.mean((h - mu) ** 2, axis=-1, keepdims=True)
    h = (h - mu) / jnp.sqrt(var + 1e-5) * params["g1"] + params["be1"]
    h = h @ params["w2"] + params["b2"]
    h = jnp.where(h > 0, h, 0.1 * h)
    mu = jnp.mean(h, axis=-1, keepdims=True)
    var = jnp.mean((h - mu) ** 2, axis=-1, keepdims=True)
    h = (h - mu) / jnp.sqrt(var + 1e-5) * params["g2"] + params["be2"]
    return h @ params["w3"].T + params["b3"]


if __name__ == "__main__":
    state_dim, action_dim, hidden_dim = 12, 4, 32

    key = jax.random.PRNGKey(0)
    k_params, k_data = jax.random.split(key)
    params = init_params(k_params, state_dim, action_dim, hidden_dim)

    # small batch (single tile) and a larger batch exercising padding + the
    # multi-tile "parallel" grid path.
    for batch in (8, 700):
        ks, ka = jax.random.split(jax.random.fold_in(k_data, batch))
        state = jax.random.normal(ks, (batch, state_dim), jnp.float32)
        action = jax.random.normal(ka, (batch, action_dim), jnp.float32)

        q = jax.block_until_ready(qnetwork_forward(state, action, params))
        q_ref = reference_forward(state, action, params)
        assert q.shape == (batch, 1)
        np.testing.assert_allclose(np.asarray(q), np.asarray(q_ref),
                                   rtol=1e-4, atol=1e-4)

    # TODO(synk): optionally fuse both SAC critics (Q1,Q2) into one call by
    # stacking weights along the output dim; left single-network to match the
    # module's forward semantics.
    print("KERNEL_OK")
</pallas_src>

<mosaic_0001>
module attributes {stable_mosaic.version = 11 : i64} {
  func.func @qnetwork_kernel(%arg0: i32, %arg1: memref<8x12xf32, #tpu.memory_space<vmem>>, %arg2: memref<8x4xf32, #tpu.memory_space<vmem>>, %arg3: memref<12x32xf32, #tpu.memory_space<vmem>>, %arg4: memref<4x32xf32, #tpu.memory_space<vmem>>, %arg5: memref<1x32xf32, #tpu.memory_space<vmem>>, %arg6: memref<1x32xf32, #tpu.memory_space<vmem>>, %arg7: memref<1x32xf32, #tpu.memory_space<vmem>>, %arg8: memref<32x32xf32, #tpu.memory_space<vmem>>, %arg9: memref<1x32xf32, #tpu.memory_space<vmem>>, %arg10: memref<1x32xf32, #tpu.memory_space<vmem>>, %arg11: memref<1x32xf32, #tpu.memory_space<vmem>>, %arg12: memref<1x32xf32, #tpu.memory_space<vmem>>, %arg13: memref<1x1xf32, #tpu.memory_space<smem>>, %arg14: memref<1x8xf32, #tpu.memory_space<vmem>>) attributes {dimension_semantics = [#tpu.dimension_semantics<parallel>], iteration_bounds = array<i64: 1>, scalar_prefetch = 0 : i64, scratch_operands = 0 : i64, tpu.core_type = #tpu.core_type<tc>, window_params = [{transform_indices = @transform_0, window_bounds = array<i64: 8, 12>}, {transform_indices = @transform_1, window_bounds = array<i64: 8, 4>}, {pipeline_mode = #tpu.pipeline_mode<synchronous>, transform_indices = @transform_2, window_bounds = array<i64: 12, 32>}, {pipeline_mode = #tpu.pipeline_mode<synchronous>, transform_indices = @transform_3, window_bounds = array<i64: 4, 32>}, {pipeline_mode = #tpu.pipeline_mode<synchronous>, transform_indices = @transform_4, window_bounds = array<i64: 1, 32>}, {pipeline_mode = #tpu.pipeline_mode<synchronous>, transform_indices = @transform_5, window_bounds = array<i64: 1, 32>}, {pipeline_mode = #tpu.pipeline_mode<synchronous>, transform_indices = @transform_6, window_bounds = array<i64: 1, 32>}, {pipeline_mode = #tpu.pipeline_mode<synchronous>, transform_indices = @transform_7, window_bounds = array<i64: 32, 32>}, {pipeline_mode = #tpu.pipeline_mode<synchronous>, transform_indices = @transform_8, window_bounds = array<i64: 1, 32>}, {pipeline_mode = #tpu.pipeline_mode<synchronous>, transform_indices = @transform_9, window_bounds = array<i64: 1, 32>}, {pipeline_mode = #tpu.pipeline_mode<synchronous>, transform_indices = @transform_10, window_bounds = array<i64: 1, 32>}, {pipeline_mode = #tpu.pipeline_mode<synchronous>, transform_indices = @transform_11, window_bounds = array<i64: 1, 32>}, {transform_indices = @transform_12, window_bounds = array<i64: 1, 1>}, {transform_indices = @transform_13, window_bounds = array<i64: 1, 8>}]} {
    %c0 = arith.constant 0 : index
    %c0_0 = arith.constant 0 : index
    %0 = vector.load %arg1[%c0, %c0_0] : memref<8x12xf32, #tpu.memory_space<vmem>>, vector<8x12xf32>
    %c0_1 = arith.constant 0 : index
    %c0_2 = arith.constant 0 : index
    %1 = vector.load %arg2[%c0_1, %c0_2] : memref<8x4xf32, #tpu.memory_space<vmem>>, vector<8x4xf32>
    %c0_3 = arith.constant 0 : index
    %c0_4 = arith.constant 0 : index
    %2 = vector.load %arg3[%c0_3, %c0_4] : memref<12x32xf32, #tpu.memory_space<vmem>>, vector<12x32xf32>
    %cst = arith.constant dense<0.000000e+00> : vector<8x32xf32>
    %3 = tpu.matmul %0, %2, %cst {dimension_numbers = #tpu.dot_dimension_numbers<[1], [0], [0], [1], [0, 0, 1, 1], [], []>} : vector<8x12xf32>, vector<12x32xf32>, vector<8x32xf32> -> vector<8x32xf32>
    %c0_5 = arith.constant 0 : index
    %c0_6 = arith.constant 0 : index
    %4 = vector.load %arg4[%c0_5, %c0_6] : memref<4x32xf32, #tpu.memory_space<vmem>>, vector<4x32xf32>
    %cst_7 = arith.constant dense<0.000000e+00> : vector<8x32xf32>
    %5 = tpu.matmul %1, %4, %cst_7 {dimension_numbers = #tpu.dot_dimension_numbers<[1], [0], [0], [1], [0, 0, 1, 1], [], []>} : vector<8x4xf32>, vector<4x32xf32>, vector<8x32xf32> -> vector<8x32xf32>
    %6 = arith.addf %3, %5 : vector<8x32xf32>
    %c0_8 = arith.constant 0 : index
    %c0_9 = arith.constant 0 : index
    %7 = vector.load %arg5[%c0_8, %c0_9] : memref<1x32xf32, #tpu.memory_space<vmem>>, vector<1x32xf32>
    %8 = vector.broadcast %7 : vector<1x32xf32> to vector<8x32xf32>
    %9 = arith.addf %6, %8 : vector<8x32xf32>
    %cst_10 = arith.constant 0.000000e+00 : f32
    %10 = vector.broadcast %cst_10 : f32 to vector<8x32xf32>
    %11 = arith.cmpf ogt, %9, %10 : vector<8x32xf32>
    %cst_11 = arith.constant 1.000000e-01 : f32
    %12 = vector.broadcast %cst_11 : f32 to vector<8x32xf32>
    %13 = arith.mulf %12, %9 : vector<8x32xf32>
    %14 = arith.select %11, %9, %13 : vector<8x32xi1>, vector<8x32xf32>
    %c0_12 = arith.constant 0 : index
    %c0_13 = arith.constant 0 : index
    %15 = vector.load %arg6[%c0_12, %c0_13] : memref<1x32xf32, #tpu.memory_space<vmem>>, vector<1x32xf32>
    %c0_14 = arith.constant 0 : index
    %c0_15 = arith.constant 0 : index
    %16 = vector.load %arg7[%c0_14, %c0_15] : memref<1x32xf32, #tpu.memory_space<vmem>>, vector<1x32xf32>
    %cst_16 = arith.constant dense<0.000000e+00> : vector<8xf32>
    %17 = vector.multi_reduction <add>, %14, %cst_16 [1] : vector<8x32xf32> to vector<8xf32>
    %18 = vector.shape_cast %17 : vector<8xf32> to vector<8x1xf32>
    %cst_17 = arith.constant 3.125000e-02 : f32
    %19 = vector.broadcast %cst_17 : f32 to vector<8x1xf32>
    %20 = arith.mulf %18, %19 : vector<8x1xf32>
    %21 = arith.mulf %14, %14 : vector<8x32xf32>
    %cst_18 = arith.constant dense<0.000000e+00> : vector<8xf32>
    %22 = vector.multi_reduction <add>, %21, %cst_18 [1] : vector<8x32xf32> to vector<8xf32>
    %23 = vector.shape_cast %22 : vector<8xf32> to vector<8x1xf32>
    %cst_19 = arith.constant 3.125000e-02 : f32
    %24 = vector.broadcast %cst_19 : f32 to vector<8x1xf32>
    %25 = arith.mulf %23, %24 : vector<8x1xf32>
    %26 = arith.mulf %20, %20 : vector<8x1xf32>
    %27 = arith.subf %25, %26 : vector<8x1xf32>
    %cst_20 = arith.constant 0.000000e+00 : f32
    %28 = vector.broadcast %cst_20 : f32 to vector<8x1xf32>
    %29 = arith.maximumf %27, %28 : vector<8x1xf32>
    %30 = vector.broadcast %20 : vector<8x1xf32> to vector<8x32xf32>
    %31 = arith.subf %14, %30 : vector<8x32xf32>
    %cst_21 = arith.constant 9.99999974E-6 : f32
    %32 = vector.broadcast %cst_21 : f32 to vector<8x1xf32>
    %33 = arith.addf %29, %32 : vector<8x1xf32>
    %34 = math.rsqrt %33 : vector<8x1xf32>
    %35 = vector.broadcast %34 : vector<8x1xf32> to vector<8x32xf32>
    %36 = arith.mulf %31, %35 : vector<8x32xf32>
    %37 = vector.broadcast %15 : vector<1x32xf32> to vector<8x32xf32>
    %38 = arith.mulf %36, %37 : vector<8x32xf32>
    %39 = vector.broadcast %16 : vector<1x32xf32> to vector<8x32xf32>
    %40 = arith.addf %38, %39 : vector<8x32xf32>
    %c0_22 = arith.constant 0 : index
    %c0_23 = arith.constant 0 : index
    %41 = vector.load %arg8[%c0_22, %c0_23] : memref<32x32xf32, #tpu.memory_space<vmem>>, vector<32x32xf32>
    %cst_24 = arith.constant dense<0.000000e+00> : vector<8x32xf32>
    %42 = tpu.matmul %40, %41, %cst_24 {dimension_numbers = #tpu.dot_dimension_numbers<[1], [0], [0], [1], [0, 0, 1, 1], [], []>} : vector<8x32xf32>, vector<32x32xf32>, vector<8x32xf32> -> vector<8x32xf32>
    %c0_25 = arith.constant 0 : index
    %c0_26 = arith.constant 0 : index
    %43 = vector.load %arg9[%c0_25, %c0_26] : memref<1x32xf32, #tpu.memory_space<vmem>>, vector<1x32xf32>
    %44 = vector.broadcast %43 : vector<1x32xf32> to vector<8x32xf32>
    %45 = arith.addf %42, %44 : vector<8x32xf32>
    %cst_27 = arith.constant 0.000000e+00 : f32
    %46 = vector.broadcast %cst_27 : f32 to vector<8x32xf32>
    %47 = arith.cmpf ogt, %45, %46 : vector<8x32xf32>
    %cst_28 = arith.constant 1.000000e-01 : f32
    %48 = vector.broadcast %cst_28 : f32 to vector<8x32xf32>
    %49 = arith.mulf %48, %45 : vector<8x32xf32>
    %50 = arith.select %47, %45, %49 : vector<8x32xi1>, vector<8x32xf32>
    %c0_29 = arith.constant 0 : index
    %c0_30 = arith.constant 0 : index
    %51 = vector.load %arg10[%c0_29, %c0_30] : memref<1x32xf32, #tpu.memory_space<vmem>>, vector<1x32xf32>
    %c0_31 = arith.constant 0 : index
    %c0_32 = arith.constant 0 : index
    %52 = vector.load %arg11[%c0_31, %c0_32] : memref<1x32xf32, #tpu.memory_space<vmem>>, vector<1x32xf32>
    %cst_33 = arith.constant dense<0.000000e+00> : vector<8xf32>
    %53 = vector.multi_reduction <add>, %50, %cst_33 [1] : vector<8x32xf32> to vector<8xf32>
    %54 = vector.shape_cast %53 : vector<8xf32> to vector<8x1xf32>
    %cst_34 = arith.constant 3.125000e-02 : f32
    %55 = vector.broadcast %cst_34 : f32 to vector<8x1xf32>
    %56 = arith.mulf %54, %55 : vector<8x1xf32>
    %57 = arith.mulf %50, %50 : vector<8x32xf32>
    %cst_35 = arith.constant dense<0.000000e+00> : vector<8xf32>
    %58 = vector.multi_reduction <add>, %57, %cst_35 [1] : vector<8x32xf32> to vector<8xf32>
    %59 = vector.shape_cast %58 : vector<8xf32> to vector<8x1xf32>
    %cst_36 = arith.constant 3.125000e-02 : f32
    %60 = vector.broadcast %cst_36 : f32 to vector<8x1xf32>
    %61 = arith.mulf %59, %60 : vector<8x1xf32>
    %62 = arith.mulf %56, %56 : vector<8x1xf32>
    %63 = arith.subf %61, %62 : vector<8x1xf32>
    %cst_37 = arith.constant 0.000000e+00 : f32
    %64 = vector.broadcast %cst_37 : f32 to vector<8x1xf32>
    %65 = arith.maximumf %63, %64 : vector<8x1xf32>
    %66 = vector.broadcast %56 : vector<8x1xf32> to vector<8x32xf32>
    %67 = arith.subf %50, %66 : vector<8x32xf32>
    %cst_38 = arith.constant 9.99999974E-6 : f32
    %68 = vector.broadcast %cst_38 : f32 to vector<8x1xf32>
    %69 = arith.addf %65, %68 : vector<8x1xf32>
    %70 = math.rsqrt %69 : vector<8x1xf32>
    %71 = vector.broadcast %70 : vector<8x1xf32> to vector<8x32xf32>
    %72 = arith.mulf %67, %71 : vector<8x32xf32>
    %73 = vector.broadcast %51 : vector<1x32xf32> to vector<8x32xf32>
    %74 = arith.mulf %72, %73 : vector<8x32xf32>
    %75 = vector.broadcast %52 : vector<1x32xf32> to vector<8x32xf32>
    %76 = arith.addf %74, %75 : vector<8x32xf32>
    %c0_39 = arith.constant 0 : index
    %c0_40 = arith.constant 0 : index
    %77 = vector.load %arg12[%c0_39, %c0_40] : memref<1x32xf32, #tpu.memory_space<vmem>>, vector<1x32xf32>
    %cst_41 = arith.constant dense<0.000000e+00> : vector<1x8xf32>
    %78 = tpu.matmul %77, %76, %cst_41 {dimension_numbers = #tpu.dot_dimension_numbers<[1], [1], [0], [0], [0, 0, 1, 0], [], []>} : vector<1x32xf32>, vector<8x32xf32>, vector<1x8xf32> -> vector<1x8xf32>
    %c0_42 = arith.constant 0 : index
    %c0_43 = arith.constant 0 : index
    %79 = memref.load %arg13[%c0_42, %c0_43] : memref<1x1xf32, #tpu.memory_space<smem>>
    %80 = vector.broadcast %79 : f32 to vector<1x8xf32>
    %81 = arith.addf %78, %80 : vector<1x8xf32>
    %c0_44 = arith.constant 0 : index
    %c0_45 = arith.constant 0 : index
    %82 = vector.load %arg14[%c0_44, %c0_45] : memref<1x8xf32, #tpu.memory_space<vmem>>, vector<1x8xf32>
    tpu.vector_store %arg14[%c0_44, %c0_45], %81 {strides = array<i32>} : memref<1x8xf32, #tpu.memory_space<vmem>>, vector<1x8xf32>,
    return
  }
  func.func @transform_0(%arg0: i32) -> (i32, i32) {
    %c0_i32 = arith.constant 0 : i32
    %c0_i32_0 = arith.constant 0 : i32
    return %arg0, %c0_i32 : i32, i32
  }
  func.func @transform_1(%arg0: i32) -> (i32, i32) {
    %c0_i32 = arith.constant 0 : i32
    %c0_i32_0 = arith.constant 0 : i32
    return %arg0, %c0_i32 : i32, i32
  }
  func.func @transform_2(%arg0: i32) -> (i32, i32) {
    %c0_i32 = arith.constant 0 : i32
    %c0_i32_0 = arith.constant 0 : i32
    %c0_i32_1 = arith.constant 0 : i32
    return %c0_i32, %c0_i32_0 : i32, i32
  }
  func.func @transform_3(%arg0: i32) -> (i32, i32) {
    %c0_i32 = arith.constant 0 : i32
    %c0_i32_0 = arith.constant 0 : i32
    %c0_i32_1 = arith.constant 0 : i32
    return %c0_i32, %c0_i32_0 : i32, i32
  }
  func.func @transform_4(%arg0: i32) -> (i32, i32) {
    %c0_i32 = arith.constant 0 : i32
    %c0_i32_0 = arith.constant 0 : i32
    %c0_i32_1 = arith.constant 0 : i32
    return %c0_i32, %c0_i32_0 : i32, i32
  }
  func.func @transform_5(%arg0: i32) -> (i32, i32) {
    %c0_i32 = arith.constant 0 : i32
    %c0_i32_0 = arith.constant 0 : i32
    %c0_i32_1 = arith.constant 0 : i32
    return %c0_i32, %c0_i32_0 : i32, i32
  }
  func.func @transform_6(%arg0: i32) -> (i32, i32) {
    %c0_i32 = arith.constant 0 : i32
    %c0_i32_0 = arith.constant 0 : i32
    %c0_i32_1 = arith.constant 0 : i32
    return %c0_i32, %c0_i32_0 : i32, i32
  }
  func.func @transform_7(%arg0: i32) -> (i32, i32) {
    %c0_i32 = arith.constant 0 : i32
    %c0_i32_0 = arith.constant 0 : i32
    %c0_i32_1 = arith.constant 0 : i32
    return %c0_i32, %c0_i32_0 : i32, i32
  }
  func.func @transform_8(%arg0: i32) -> (i32, i32) {
    %c0_i32 = arith.constant 0 : i32
    %c0_i32_0 = arith.constant 0 : i32
    %c0_i32_1 = arith.constant 0 : i32
    return %c0_i32, %c0_i32_0 : i32, i32
  }
  func.func @transform_9(%arg0: i32) -> (i32, i32) {
    %c0_i32 = arith.constant 0 : i32
    %c0_i32_0 = arith.constant 0 : i32
    %c0_i32_1 = arith.constant 0 : i32
    return %c0_i32, %c0_i32_0 : i32, i32
  }
  func.func @transform_10(%arg0: i32) -> (i32, i32) {
    %c0_i32 = arith.constant 0 : i32
    %c0_i32_0 = arith.constant 0 : i32
    %c0_i32_1 = arith.constant 0 : i32
    return %c0_i32, %c0_i32_0 : i32, i32
  }
  func.func @transform_11(%arg0: i32) -> (i32, i32) {
    %c0_i32 = arith.constant 0 : i32
    %c0_i32_0 = arith.constant 0 : i32
    %c0_i32_1 = arith.constant 0 : i32
    return %c0_i32, %c0_i32_0 : i32, i32
  }
  func.func @transform_12(%arg0: i32) -> (i32, i32) {
    %c0_i32 = arith.constant 0 : i32
    %c0_i32_0 = arith.constant 0 : i32
    %c0_i32_1 = arith.constant 0 : i32
    return %c0_i32, %c0_i32_0 : i32, i32
  }
  func.func @transform_13(%arg0: i32) -> (i32, i32) {
    %c0_i32 = arith.constant 0 : i32
    %c0_i32_0 = arith.constant 0 : i32
    return %c0_i32, %arg0 : i32, i32
  }
}

</mosaic_0001>

<llo_original>
// kernel: tpu_custom_call.1
$region0: #{tpu_custom_call.1}
  #allocation0 [shape = 'u32[]', space=smem, size = 0x4, offset = 0x4, fixed_abs, tag = 'smem constant byte address 0x4 - core index']
  #allocation1 [shape = 'u32[72,128]{1,0:T(1,128)}', space=vmem, size = 0x9000, scoped, tag = 'internal scratch']
  #allocation2 [shape = 'f32[1,1]{1,0:T(1,128)S(6)}', space=smem, size = 0x200, scoped, tag = 'scoped memory for tpu_custom_call.1']
  %s0 = inlined_call_operand.vmem [shape: f32[8,12], index: 0, kind: input, shape index: {}]
  %s1 = inlined_call_operand.vmem [shape: f32[8,4], index: 1, kind: input, shape index: {}]
  %s2 = inlined_call_operand.hbm [shape: f32[12,32], index: 2, kind: input, shape index: {}]
  %s3 = inlined_call_operand.vmem [shape: f32[4,32], index: 3, kind: input, shape index: {}]
  %s4 = inlined_call_operand.vmem [shape: f32[1,32], index: 4, kind: input, shape index: {}]
  %s5 = inlined_call_operand.vmem [shape: f32[1,32], index: 5, kind: input, shape index: {}]
  %s6 = inlined_call_operand.vmem [shape: f32[1,32], index: 6, kind: input, shape index: {}]
  %s7 = inlined_call_operand.hbm [shape: f32[32,32], index: 7, kind: input, shape index: {}]
  %s8 = inlined_call_operand.vmem [shape: f32[1,32], index: 8, kind: input, shape index: {}]
  %s9 = inlined_call_operand.vmem [shape: f32[1,32], index: 9, kind: input, shape index: {}]
  %s10 = inlined_call_operand.vmem [shape: f32[1,32], index: 10, kind: input, shape index: {}]
  %s11 = inlined_call_operand.vmem [shape: f32[1,32], index: 11, kind: input, shape index: {}]
  %s12 = inlined_call_operand.<no memory space> [shape: f32[1,1], index: 12, kind: input, shape index: {}]
  %s13 = inlined_call_operand.hbm [shape: f32[1,8], index: 13, kind: output, shape index: {}]
  %s14 = sld [smem:[#allocation0]]
  $region70: #{tpu_custom_call.1} parent=0
    _
  %s16 = ssub.s32 1, %s14
  %s17 = scalar_select 0, %s16, %s14
  %18 = sst [smem:[#allocation2]] %s12
  $region1: #{tpu_custom_call.1} parent=0
    #allocation3 [shape = 'u8[8192]{0}', space=vmem, size = 0x2000, scoped, tag = 'input window, operand 2, single buffered']
    #allocation4 [shape = 's32[1]{0}', space=sflag, size = 0x4, scoped, tag = 'scoped memory for tpu_custom_call.1']
    #allocation5 [shape = 's32[1]{0}', space=sflag, size = 0x4, scoped, tag = 'scoped memory for tpu_custom_call.1']
    #allocation6 [shape = 'u8[16384]{0}', space=vmem, size = 0x4000, scoped, tag = 'input window, operand 7, single buffered']
    #allocation7 [shape = 's32[1]{0}', space=sflag, size = 0x4, scoped, tag = 'scoped memory for tpu_custom_call.1']
    #allocation8 [shape = 'u8[512]{0}', space=vmem, size = 0x400, scoped, tag = 'output window, operand 0, single buffered']
    %19 = vsyncpa [#allocation4], 0
    %20 = vsyncpa [#allocation7], 0
    %21 = vsyncpa [#allocation5], 0
    // Predicated region
    $region2: #{tpu_custom_call.1} parent=1 // pred_check
      _
    $region3: #{tpu_custom_call.1} parent=1 // pred_check_branch
      %23 = sbr.rel (0) target = $region5
    $region4: #{tpu_custom_call.1} parent=1 // pred_region
      _
    $region5: #{tpu_custom_call.1} parent=1 // pred_fallthru
      _
    // Predicated region
    $region6: #{tpu_custom_call.1} parent=1 // pred_check
      _
    $region7: #{tpu_custom_call.1} parent=1 // pred_check_branch
      %25 = sbr.rel (0) target = $region9
    $region8: #{tpu_custom_call.1} parent=1 // pred_region
      _
    $region9: #{tpu_custom_call.1} parent=1 // pred_fallthru
      _
    // Predicated region
    $region10: #{tpu_custom_call.1} parent=1 // pred_check
      _
    $region11: #{tpu_custom_call.1} parent=1 // pred_check_branch
      %27 = sbr.rel (0) target = $region13
    $region12: #{tpu_custom_call.1} parent=1 // pred_region
      %29 = vsyncadd [#allocation4], 0
      %s30 = sshll.u32 %s2, 4
      %s31 = int_to_ptr.hbm [resolvable:$true] %s30
      %s32 = sshll.u32 [#allocation3], 4
      %s33 = int_to_ptr.vmem [resolvable:$true] %s32
      %38 = dma.hbm_to_vmem [thread:$0]  %s31, 256, %s33, [#allocation4], 128, 128, 8
    $region13: #{tpu_custom_call.1} parent=1 // pred_fallthru
      _
    // Predicated region
    $region14: #{tpu_custom_call.1} parent=1 // pred_check
      _
    $region15: #{tpu_custom_call.1} parent=1 // pred_check_branch
      %40 = sbr.rel (0) target = $region17
    $region16: #{tpu_custom_call.1} parent=1 // pred_region
      _
    $region17: #{tpu_custom_call.1} parent=1 // pred_fallthru
      _
    // Predicated region
    $region18: #{tpu_custom_call.1} parent=1 // pred_check
      _
    $region19: #{tpu_custom_call.1} parent=1 // pred_check_branch
      %42 = sbr.rel (0) target = $region21
    $region20: #{tpu_custom_call.1} parent=1 // pred_region
      _
    $region21: #{tpu_custom_call.1} parent=1 // pred_fallthru
      _
    // Predicated region
    $region22: #{tpu_custom_call.1} parent=1 // pred_check
      _
    $region23: #{tpu_custom_call.1} parent=1 // pred_check_branch
      %44 = sbr.rel (0) target = $region25
    $region24: #{tpu_custom_call.1} parent=1 // pred_region
      _
    $region25: #{tpu_custom_call.1} parent=1 // pred_fallthru
      _
    // Predicated region
    $region26: #{tpu_custom_call.1} parent=1 // pred_check
      _
    $region27: #{tpu_custom_call.1} parent=1 // pred_check_branch
      %46 = sbr.rel (0) target = $region29
    $region28: #{tpu_custom_call.1} parent=1 // pred_region
      _
    $region29: #{tpu_custom_call.1} parent=1 // pred_fallthru
      _
    // Predicated region
    $region30: #{tpu_custom_call.1} parent=1 // pred_check
      _
    $region31: #{tpu_custom_call.1} parent=1 // pred_check_branch
      %48 = sbr.rel (0) target = $region33
    $region32: #{tpu_custom_call.1} parent=1 // pred_region
      %50 = vsyncadd [#allocation7], 0
      %s51 = sshll.u32 %s7, 4
      %s52 = int_to_ptr.hbm [resolvable:$true] %s51
      %s53 = sshll.u32 [#allocation6], 4
      %s54 = int_to_ptr.vmem [resolvable:$true] %s53
      %59 = dma.hbm_to_vmem [thread:$0]  %s52, 512, %s54, [#allocation7], 128, 128, 8
    $region33: #{tpu_custom_call.1} parent=1 // pred_fallthru
      _
    // Predicated region
    $region34: #{tpu_custom_call.1} parent=1 // pred_check
      _
    $region35: #{tpu_custom_call.1} parent=1 // pred_check_branch
      %61 = sbr.rel (0) target = $region37
    $region36: #{tpu_custom_call.1} parent=1 // pred_region
      _
    $region37: #{tpu_custom_call.1} parent=1 // pred_fallthru
      _
    // Predicated region
    $region38: #{tpu_custom_call.1} parent=1 // pred_check
      _
    $region39: #{tpu_custom_call.1} parent=1 // pred_check_branch
      %63 = sbr.rel (0) target = $region41
    $region40: #{tpu_custom_call.1} parent=1 // pred_region
      _
    $region41: #{tpu_custom_call.1} parent=1 // pred_fallthru
      _
    // Predicated region
    $region42: #{tpu_custom_call.1} parent=1 // pred_check
      _
    $region43: #{tpu_custom_call.1} parent=1 // pred_check_branch
      %65 = sbr.rel (0) target = $region45
    $region44: #{tpu_custom_call.1} parent=1 // pred_region
      _
    $region45: #{tpu_custom_call.1} parent=1 // pred_fallthru
      _
    // Predicated region
    $region46: #{tpu_custom_call.1} parent=1 // pred_check
      _
    $region47: #{tpu_custom_call.1} parent=1 // pred_check_branch
      %67 = sbr.rel (0) target = $region49
    $region48: #{tpu_custom_call.1} parent=1 // pred_region
      _
    $region49: #{tpu_custom_call.1} parent=1 // pred_fallthru
      _
    // Predicated region
    $region50: #{tpu_custom_call.1} parent=1 // pred_check
      _
    $region51: #{tpu_custom_call.1} parent=1 // pred_check_branch
      %69 = sbr.rel (0) target = $region53
    $region52: #{tpu_custom_call.1} parent=1 // pred_region
      _
    $region53: #{tpu_custom_call.1} parent=1 // pred_fallthru
      _
    // Predicated region
    $region54: #{tpu_custom_call.1} parent=1 // pred_check
      _
    $region55: #{tpu_custom_call.1} parent=1 // pred_check_branch
      %71 = sbr.rel (0) target = $region57
    $region56: #{tpu_custom_call.1} parent=1 // pred_region
      %73 = dma.done [#allocation4], 256
    $region57: #{tpu_custom_call.1} parent=1 // pred_fallthru
      _
    // Predicated region
    $region58: #{tpu_custom_call.1} parent=1 // pred_check
      _
    $region59: #{tpu_custom_call.1} parent=1 // pred_check_branch
      %75 = sbr.rel (0) target = $region61
    $region60: #{tpu_custom_call.1} parent=1 // pred_region
      %77 = dma.done [#allocation7], 512
    $region61: #{tpu_custom_call.1} parent=1 // pred_fallthru
      _
    %v78 = vld [vmem:[%s0] sm:$0xff]
    %v79 = vld [vmem:[%s1] sm:$0xff]
    %v80 = vld [vmem:[#allocation3] sm:$0xff]
    %v81 = vld [vmem:[#allocation3 + $0x8] sm:$0xf]
    %v82 = vld [vmem:[%s3] sm:$0xf]
    %vm83 = vcmask 31744
    %v85 = vsel %vm83, %v79, 0
    %vm87 = vcmask 1043456
    %v89 = vsel %vm87, %v82, 0
    %91 = vmatpush.msra.mxu0 0.0
    %92 = vmatpush.msra.mxu0 0.0
    %93 = vmatpush.msra.mxu0 0.0
    %94 = vmatpush.msra.mxu0 0.0
    %95 = vmatpush.msra.mxu0 0.0
    %96 = vmatpush.msra.mxu0 0.0
    %97 = vmatpush.msra.mxu0 0.0
    %98 = vmatpush.msra.mxu0 0.0
    %99 = vmatpush.msra.mxu0 0.0
    %100 = vmatpush.msra.mxu0 0.0
    %101 = vmatpush.msra.mxu0 0.0
    %102 = vmatpush.msra.mxu0 0.0
    %103 = vmatpush.msra.mxu0 0.0
    %104 = vmatpush.msra.mxu0 0.0
    %105 = vmatpush.msra.mxu0 0.0
    %106 = vmatpush.msra.mxu0 %v89
    %107 = vmatmul.f32.gmra.mxu0 %v85
    %v108 = vpop.f32.mrf.mxu0
    %v109 = vadd.f32 0.0, %v108
    %110 = vdwg.mxu0
    %vm111 = vcmask 97280
    %v113 = vsel %vm111, %v78, 0
    %v116 = vsel %vm87, %v81, 0
    %118 = vmatpush.msra.mxu0 0.0
    %119 = vmatpush.msra.mxu0 0.0
    %120 = vmatpush.msra.mxu0 0.0
    %121 = vmatpush.msra.mxu0 0.0
    %122 = vmatpush.msra.mxu0 0.0
    %123 = vmatpush.msra.mxu0 0.0
    %124 = vmatpush.msra.mxu0 0.0
    %125 = vmatpush.msra.mxu0 0.0
    %126 = vmatpush.msra.mxu0 0.0
    %127 = vmatpush.msra.mxu0 0.0
    %128 = vmatpush.msra.mxu0 0.0
    %129 = vmatpush.msra.mxu0 0.0
    %130 = vmatpush.msra.mxu0 0.0
    %131 = vmatpush.msra.mxu0 0.0
    %132 = vmatpush.msra.mxu0 %v116
    %133 = vmatpush.msra.mxu0 %v80
    %134 = vmatmul.f32.gmra.mxu0 %v113
    %v135 = vpop.f32.mrf.mxu0
    %v136 = vadd.f32 %v109, %v135
    %137 = vdwg.mxu0
    %v138 = vld [vmem:[%s4] sm:$0x1]
    %v140 = vperm.slane %v138, 0
    %v142 = vadd.f32 %v136, %v140
    %vm143 = vcmp.gt.f32.partialorder %v142, 0.0
    %v144 = vmul.f32 %v142, 0.1
    %v145 = vsel %vm143, %v142, %v144
    %v146 = vld [vmem:[%s5] sm:$0x1]
    %v147 = vld [vmem:[%s6] sm:$0x1]
    %vm148 = vcmask 261120
    %v149 = vsel %vm148, %v145, 0.0
    %150 = vadd.xlane.f32.xlu0 %v149
    %v151 = vpop.xlane.xlu0 %150
    %v152 = vmul.f32 %v151, 0.03125
    %v153 = vmul.f32 %v145, %v145
    %v154 = vsel %vm148, %v153, 0.0
    %155 = vadd.xlane.f32.xlu0 %v154
    %v156 = vpop.xlane.xlu0 %155
    %v157 = vmul.f32 %v156, 0.03125
    %v158 = vmul.f32 %v152, %v152
    %v159 = vsub.f32 %v157, %v158
    %v160 = vmax.f32 %v159, 0.0
    %v161 = vsub.f32 %v145, %v152
    %v162 = vadd.f32 %v160, 1e-05
    %v163 = vrsqrt.pop %v162
    %v164 = vmul.f32 %v163, %v162
    %v165 = vmul.f32 %v164, %v163
    %v166 = vmul.f32 0.5, %v165
    %v167 = vsub.f32 1.5, %v166
    %v168 = vmul.f32 %v163, %v167
    %vm169 = vweird.f32 %v162
    %vm170 = vweird.f32 %v163
    %vm171 = vmor %vm169, %vm170
    %v172 = vsel %vm171, %v163, %v168
    %v173 = vmul.f32 %v161, %v172
    %v175 = vperm.slane %v146, 0
    %v177 = vmul.f32 %v173, %v175
    %v179 = vperm.slane %v147, 0
    %v181 = vadd.f32 %v177, %v179
    %v182 = vld [vmem:[#allocation6] sm:$0xff]
    %v183 = vld [vmem:[#allocation6 + $0x8] sm:$0xff]
    %v184 = vld [vmem:[#allocation6 + $0x10] sm:$0xff]
    %v185 = vld [vmem:[#allocation6 + $0x18] sm:$0xff]
    %v186 = vld [vmem:[%s8] sm:$0x1]
    %v188 = vperm.slane %v186, 0
    %v191 = vsel %vm148, %v181, 0
    %193 = vmatpush.msra.mxu0 0.0
    %194 = vmatpush.msra.mxu0 0.0
    %195 = vmatpush.msra.mxu0 0.0
    %196 = vmatpush.msra.mxu0 0.0
    %197 = vmatpush.msra.mxu0 0.0
    %198 = vmatpush.msra.mxu0 0.0
    %199 = vmatpush.msra.mxu0 0.0
    %200 = vmatpush.msra.mxu0 0.0
    %201 = vmatpush.msra.mxu0 0.0
    %202 = vmatpush.msra.mxu0 0.0
    %203 = vmatpush.msra.mxu0 0.0
    %204 = vmatpush.msra.mxu0 0.0
    %205 = vmatpush.msra.mxu0 %v185
    %206 = vmatpush.msra.mxu0 %v184
    %207 = vmatpush.msra.mxu0 %v183
    %208 = vmatpush.msra.mxu0 %v182
    %209 = vmatmul.f32.gmra.mxu0 %v191
    %v210 = vpop.f32.mrf.mxu0
    %v211 = vadd.f32 %v188, %v210
    %212 = vdwg.mxu0
    %vm213 = vcmp.gt.f32.partialorder %v211, 0.0
    %v214 = vmul.f32 %v211, 0.1
    %v215 = vsel %vm213, %v211, %v214
    %v216 = vld [vmem:[%s9] sm:$0x1]
    %v217 = vld [vmem:[%s10] sm:$0x1]
    %v218 = vsel %vm148, %v215, 0.0
    %219 = vadd.xlane.f32.xlu0 %v218
    %v220 = vpop.xlane.xlu0 %219
    %v221 = vmul.f32 %v220, 0.03125
    %v222 = vmul.f32 %v215, %v215
    %v223 = vsel %vm148, %v222, 0.0
    %224 = vadd.xlane.f32.xlu0 %v223
    %v225 = vpop.xlane.xlu0 %224
    %v226 = vmul.f32 %v225, 0.03125
    %v227 = vmul.f32 %v221, %v221
    %v228 = vsub.f32 %v226, %v227
    %v229 = vmax.f32 %v228, 0.0
    %v230 = vsub.f32 %v215, %v221
    %v231 = vadd.f32 %v229, 1e-05
    %v232 = vrsqrt.pop %v231
    %v233 = vmul.f32 %v232, %v231
    %v234 = vmul.f32 %v233, %v232
    %v235 = vmul.f32 0.5, %v234
    %v236 = vsub.f32 1.5, %v235
    %v237 = vmul.f32 %v232, %v236
    %vm238 = vweird.f32 %v231
    %vm239 = vweird.f32 %v232
    %vm240 = vmor %vm238, %vm239
    %v241 = vsel %vm240, %v232, %v237
    %v242 = vmul.f32 %v230, %v241
    %v244 = vperm.slane %v216, 0
    %v246 = vmul.f32 %v242, %v244
    %v248 = vperm.slane %v217, 0
    %v250 = vadd.f32 %v246, %v248
    %v251 = vld [vmem:[%s11] sm:$0x1]
    %s252 = sld [smem:[#allocation2]]
    %v253 = vstv %s252
    %v255 = vsel %vm148, %v251, 0
    %v258 = vsel %vm148, %v250, 0
    %260 = vmatpush.xpose.msra.mxu0 0.0
    %261 = vmatpush.xpose.msra.mxu0 0.0
    %262 = vmatpush.xpose.msra.mxu0 0.0
    %263 = vmatpush.xpose.msra.mxu0 0.0
    %264 = vmatpush.xpose.msra.mxu0 0.0
    %265 = vmatpush.xpose.msra.mxu0 0.0
    %266 = vmatpush.xpose.msra.mxu0 0.0
    %267 = vmatpush.xpose.msra.mxu0 0.0
    %268 = vmatpush.xpose.msra.mxu0 0.0
    %269 = vmatpush.xpose.msra.mxu0 0.0
    %270 = vmatpush.xpose.msra.mxu0 0.0
    %271 = vmatpush.xpose.msra.mxu0 0.0
    %272 = vmatpush.xpose.msra.mxu0 0.0
    %273 = vmatpush.xpose.msra.mxu0 0.0
    %274 = vmatpush.xpose.msra.mxu0 0.0
    %275 = vmatpush.xpose.msra.mxu0 %v258
    %276 = vmatmul.f32.gmra.mxu0 %v255
    %v277 = vpop.f32.mrf.mxu0
    %v278 = vadd.f32 %v253, %v277
    %279 = vdwg.mxu0
    %vm280 = vcmask 57344
    %281 = vst.msk [vmem:[#allocation8] sm:$0x1] %vm280, %v278
    // Predicated region
    $region62: #{tpu_custom_call.1} parent=1 // pred_check
      _
    $region63: #{tpu_custom_call.1} parent=1 // pred_check_branch
      %283 = sbr.rel (0) target = $region65
    $region64: #{tpu_custom_call.1} parent=1 // pred_region
      %285 = vsyncadd [#allocation5], 0
      %s287 = sshll.u32 [#allocation8], 4
      %s288 = int_to_ptr.vmem [resolvable:$true] %s287
      %s289 = sshll.u32 %s13, 4
      %s290 = int_to_ptr.hbm [resolvable:$true] %s289
      %292 = dma.vmem_to_hbm [thread:$0]  %s288, 16, %s290, [#allocation5]
    $region65: #{tpu_custom_call.1} parent=1 // pred_fallthru
      _
    // Predicated region
    $region66: #{tpu_custom_call.1} parent=1 // pred_check
      _
    $region67: #{tpu_custom_call.1} parent=1 // pred_check_branch
      %294 = sbr.rel (0) target = $region69
    $region68: #{tpu_custom_call.1} parent=1 // pred_region
      %296 = dma.done [#allocation5], 16
    $region69: #{tpu_custom_call.1} parent=1 // pred_fallthru
      _
    %297 = vsyncpa [#allocation4], 1
    %298 = vsyncpa [#allocation7], 1
    %299 = vsyncpa [#allocation5], 1

</llo_original>
